<compile_context>
chip_gen: v5e
topology: v5e:2x2
jax: 0.10.0
libtpu: 0.0.40
codegen_flags: <defaults>
</compile_context>

<pallas_src>
import functools

import jax
import jax.numpy as jnp
from jax.experimental import pallas as pl
from jax.experimental.pallas import tpu as pltpu


def _round_up(x, mult):
    return ((x + mult - 1) // mult) * mult


def _cdiv(a, b):
    return (a + b - 1) // b


# ---------------------------------------------------------------------------
# Per-generation tiling tables.
# bf16 arithmetic intensity of a (tm, tn) output tile is ~tm*tn/(tm+tn) FLOP/B:
#   v5e crossover ~240 FLOP/B -> 512x1024 (341)
#   v6e crossover ~650 FLOP/B -> 1024x2048 (683)
#   v7x crossover ~310 FLOP/B -> 512x1024 (341); only 64 MiB VMEM, keep loss modest
# ---------------------------------------------------------------------------
_TPU_CONFIGS = {
    "v5e": dict(fwd=(512, 1024, 1024), loss=(512, 1024, 512), lane=128, vmem_cap=100 << 20),
    "v6e": dict(fwd=(1024, 2048, 1024), loss=(1024, 2048, 512), lane=256, vmem_cap=100 << 20),
    "v7x": dict(fwd=(512, 1024, 1024), loss=(512, 1024, 512), lane=256, vmem_cap=48 << 20),
    "default": dict(fwd=(512, 1024, 512), loss=(512, 1024, 512), lane=128, vmem_cap=48 << 20),
}


def _tpu_generation():
    try:
        kind = jax.devices()[0].device_kind.lower()
    except Exception:
        return "default"
    if "v5 lite" in kind or "v5e" in kind or "v5lite" in kind:
        return "v5e"
    if "v6" in kind:
        return "v6e"
    if "v7" in kind or "7x" in kind:
        return "v7x"
    return "default"


def _pick_mn_tiles(m, n, tm_def, tn_def, lane, use_bf16):
    # Shrink tiles for small problems; tm stays a multiple of 16 (bf16 sublane
    # packing) / 8 (f32), tn a multiple of the per-gen MXU lane width.
    sub_m = 16 if use_bf16 else 8
    tm = min(tm_def, _round_up(m, sub_m))
    tn = min(tn_def, _round_up(n, lane))
    return tm, tn


def _pick_k_tiles(k, tk_def, use_bf16):
    # Small K (typical NMF rank): pad only to the dtype sublane multiple and use a
    # single K block (block dim == full padded array dim -> exempt from 128 rule).
    sub_k = 16 if use_bf16 else 8
    if k <= tk_def:
        tk = _round_up(k, sub_k)
        return tk, tk
    n_steps = _cdiv(k, tk_def)
    tk = _round_up(_cdiv(k, n_steps), 128)
    return tk, _round_up(k, tk)


def _prep_wh(W, H, Kpad, use_bf16):
    k = W.shape[1]
    if use_bf16:
        W = W.astype(jnp.bfloat16)
        H = H.astype(jnp.bfloat16)
    if Kpad != k:
        # Only the contraction dim is padded (zeros are exact for the matmul).
        W = jnp.pad(W, ((0, 0), (0, Kpad - k)))
        H = jnp.pad(H, ((0, Kpad - k), (0, 0)))
    return W, H


def _vmem_limit(need_bytes, cap):
    return int(min(max(int(need_bytes * 1.5), 32 << 20), cap))


# ---------------------------------------------------------------------------
# Forward kernel: out = W @ H
# The output block index is constant along the K grid axis, so it stays resident
# in VMEM and we accumulate straight into it (f32).
# ---------------------------------------------------------------------------
def _nmf_matmul_kernel(w_ref, h_ref, o_ref, *, precision):
    @pl.when(pl.program_id(2) == 0)
    def _():
        o_ref[...] = jnp.zeros_like(o_ref)

    o_ref[...] += jnp.dot(
        w_ref[...], h_ref[...],
        preferred_element_type=jnp.float32, precision=precision)


# ---------------------------------------------------------------------------
# Fused loss kernel: per-i partial sums of ||X - W@H||^2.
# acc (VMEM scratch) accumulates the tile product over K; on the last K step the
# masked squared residual is reduced and added into this i's (8,128) partial
# block (resident across j, k).  i can run "parallel" (v7x second TensorCore).
# ---------------------------------------------------------------------------
def _nmf_loss_kernel(w_ref, h_ref, x_ref, part_ref, acc_ref, *,
                     m, n, tm, tn, needs_mask, precision):
    i = pl.program_id(0)
    j = pl.program_id(1)
    kk = pl.program_id(2)

    @pl.when((j == 0) & (kk == 0))
    def _():
        part_ref[...] = jnp.zeros_like(part_ref)

    @pl.when(kk == 0)
    def _():
        acc_ref[...] = jnp.zeros_like(acc_ref)

    acc_ref[...] += jnp.dot(
        w_ref[...], h_ref[...],
        preferred_element_type=jnp.float32, precision=precision)

    @pl.when(kk == pl.num_programs(2) - 1)
    def _():
        d = x_ref[...].astype(jnp.float32) - acc_ref[...]
        if needs_mask:
            # Edge tiles of an unpadded (m, n) problem contain garbage rows/cols;
            # mask them so they don't contaminate the scalar loss.
            row = jax.lax.broadcasted_iota(jnp.int32, (tm, tn), 0) + i * tm
            col = jax.lax.broadcasted_iota(jnp.int32, (tm, tn), 1) + j * tn
            d = jnp.where((row < m) & (col < n), d, 0.0)
        s = jnp.sum(d * d)
        onehot = ((jax.lax.broadcasted_iota(jnp.int32, (8, 128), 0) == 0)
                  & (jax.lax.broadcasted_iota(jnp.int32, (8, 128), 1) == 0))
        part_ref[...] += jnp.where(onehot, s, 0.0)


# ---------------------------------------------------------------------------
# Wrappers
# ---------------------------------------------------------------------------
@functools.partial(jax.jit, static_argnames=("use_bf16", "tiles"))
def nmf_forward(W, H, *, use_bf16=True, tiles=None):
    m, k = W.shape
    k2, n = H.shape
    assert k == k2

    cfg = _TPU_CONFIGS[_tpu_generation()]
    tm_def, tn_def, tk_def = tiles if tiles is not None else cfg["fwd"]
    tm, tn = _pick_mn_tiles(m, n, tm_def, tn_def, cfg["lane"], use_bf16)
    tk, Kpad = _pick_k_tiles(k, tk_def, use_bf16)
    Wp, Hp = _prep_wh(W, H, Kpad, use_bf16)

    gi, gj, gk = _cdiv(m, tm), _cdiv(n, tn), Kpad // tk
    isz = Wp.dtype.itemsize
    need = 2 * (tm * tk + tk * tn) * isz + 2 * tm * tn * 4
    precision = None if use_bf16 else jax.lax.Precision.HIGHEST

    out = pl.pallas_call(
        functools.partial(_nmf_matmul_kernel, precision=precision),
        out_shape=jax.ShapeDtypeStruct((m, n), jnp.float32),
        grid_spec=pltpu.PrefetchScalarGridSpec(
            num_scalar_prefetch=0,
            grid=(gi, gj, gk),
            in_specs=[
                pl.BlockSpec((tm, tk), lambda i, j, kk: (i, kk)),
                pl.BlockSpec((tk, tn), lambda i, j, kk: (kk, j)),
            ],
            out_specs=pl.BlockSpec((tm, tn), lambda i, j, kk: (i, j)),
        ),
        compiler_params=pltpu.CompilerParams(
            dimension_semantics=("parallel", "parallel", "arbitrary"),
            vmem_limit_bytes=_vmem_limit(need, cfg["vmem_cap"]),
        ),
        cost_estimate=pl.CostEstimate(
            flops=2 * m * n * Kpad,
            transcendentals=0,
            # W is re-read once per N tile, H once per M tile, plus output write.
            bytes_accessed=(Wp.size * isz) * gj + (Hp.size * isz) * gi + m * n * 4,
        ),
    )(Wp, Hp)
    return out


@functools.partial(jax.jit, static_argnames=("use_bf16", "tiles"))
def nmf_loss(W, H, X, *, use_bf16=True, tiles=None):
    m, k = W.shape
    k2, n = H.shape
    assert k == k2 and X.shape == (m, n)

    cfg = _TPU_CONFIGS[_tpu_generation()]
    tm_def, tn_def, tk_def = tiles if tiles is not None else cfg["loss"]
    tm, tn = _pick_mn_tiles(m, n, tm_def, tn_def, cfg["lane"], use_bf16)
    tk, Kpad = _pick_k_tiles(k, tk_def, use_bf16)
    Wp, Hp = _prep_wh(W, H, Kpad, use_bf16)

    gi, gj, gk = _cdiv(m, tm), _cdiv(n, tn), Kpad // tk
    isz = Wp.dtype.itemsize
    xsz = X.dtype.itemsize
    needs_mask = (m % tm != 0) or (n % tn != 0)
    need = (2 * (tm * tk + tk * tn) * isz        # double-buffered W / H tiles
            + 2 * tm * tn * xsz                  # X tile
            + tm * tn * 4                        # f32 accumulator scratch
            + 2 * 8 * 128 * 4)                   # partial-sum output block
    precision = None if use_bf16 else jax.lax.Precision.HIGHEST

    partials = pl.pallas_call(
        functools.partial(_nmf_loss_kernel, m=m, n=n, tm=tm, tn=tn,
                          needs_mask=needs_mask, precision=precision),
        out_shape=jax.ShapeDtypeStruct((gi * 8, 128), jnp.float32),
        grid_spec=pltpu.PrefetchScalarGridSpec(
            num_scalar_prefetch=0,
            grid=(gi, gj, gk),
            in_specs=[
                pl.BlockSpec((tm, tk), lambda i, j, kk: (i, kk)),
                pl.BlockSpec((tk, tn), lambda i, j, kk: (kk, j)),
                pl.BlockSpec((tm, tn), lambda i, j, kk: (i, j)),
            ],
            out_specs=pl.BlockSpec((8, 128), lambda i, j, kk: (i, 0)),
            scratch_shapes=[pltpu.VMEM((tm, tn), jnp.float32)],
        ),
        compiler_params=pltpu.CompilerParams(
            # i is parallel (independent per-row-block partial sums); j and the
            # K reduction must run sequentially per i.
            dimension_semantics=("parallel", "arbitrary", "arbitrary"),
            vmem_limit_bytes=_vmem_limit(need, cfg["vmem_cap"]),
        ),
        cost_estimate=pl.CostEstimate(
            flops=2 * m * n * Kpad + 3 * m * n,
            transcendentals=0,
            bytes_accessed=(Wp.size * isz) * gj + (Hp.size * isz) * gi
                           + m * n * xsz + gi * 8 * 128 * 4,
        ),
    )(Wp, Hp, X)
    return jnp.sum(partials)


class NMF:
    """JAX/Pallas port of the PyTorch NMF module (forward / predict / loss)."""

    def __init__(self, m, n, k, key, use_bf16=True):
        kw, kh = jax.random.split(key)
        # torch.rand -> uniform [0, 1)
        self._W = jax.random.uniform(kw, (m, k), dtype=jnp.float32)
        self._H = jax.random.uniform(kh, (k, n), dtype=jnp.float32)
        self._use_bf16 = use_bf16

    @property
    def W(self):
        return self._W

    @property
    def H(self):
        return self._H

    def forward(self):
        return nmf_forward(self._W, self._H, use_bf16=self._use_bf16)

    def predict(self):
        return self.forward()

    def loss(self, X):
        return nmf_loss(self._W, self._H, X, use_bf16=self._use_bf16)

    # TODO(synk): fit()/update_H() (torch Adam + autograd training loop) not ported.


if __name__ == "__main__":
    key = jax.random.PRNGKey(0)
    kx, kmodel, kx2, kmodel2 = jax.random.split(key, 4)

    # ---- Case A: small, non-tile-aligned shapes; per-generation default tiles ----
    m, n, k = 96, 200, 72
    X = jax.random.uniform(kx, (m, n), dtype=jnp.float32)

    model = NMF(m, n, k, kmodel, use_bf16=True)
    out = jax.block_until_ready(model.forward())
    assert out.shape == (m, n) and out.dtype == jnp.float32

    ref_bf16 = jnp.dot(model.W.astype(jnp.bfloat16), model.H.astype(jnp.bfloat16),
                       preferred_element_type=jnp.float32)
    ref_f32 = jnp.dot(model.W, model.H, precision=jax.lax.Precision.HIGHEST)
    assert jnp.allclose(out, ref_bf16, atol=1e-2, rtol=1e-2)
    assert jnp.allclose(out, ref_f32, atol=0.5, rtol=5e-2)

    loss = jax.block_until_ready(model.loss(X))
    loss_ref = jnp.sum((X - ref_bf16) ** 2)
    assert jnp.allclose(loss, loss_ref, rtol=1e-3)

    # f32 accuracy path (precision=HIGHEST matmul inside the kernel)
    model32 = NMF(m, n, k, kmodel, use_bf16=False)
    out32 = jax.block_until_ready(model32.forward())
    assert jnp.allclose(out32, ref_f32, atol=1e-3, rtol=1e-3)
    loss32 = jax.block_until_ready(model32.loss(X))
    loss32_ref = jnp.sum((X - ref_f32) ** 2)
    assert jnp.allclose(loss32, loss32_ref, rtol=1e-3)

    # ---- Case B: forced small tiles -> multi-block grid, K-reduction loop,
    #      partial (masked) edge blocks without any M/N padding. ----
    m2, n2, k2 = 96, 200, 300
    X2 = jax.random.uniform(kx2, (m2, n2), dtype=jnp.float32)
    kw2, kh2 = jax.random.split(kmodel2)
    W2 = jax.random.uniform(kw2, (m2, k2), dtype=jnp.float32)
    H2 = jax.random.uniform(kh2, (k2, n2), dtype=jnp.float32)

    small_tiles = (32, 128, 128)
    out2 = jax.block_until_ready(nmf_forward(W2, H2, use_bf16=True, tiles=small_tiles))
    ref2 = jnp.dot(W2.astype(jnp.bfloat16), H2.astype(jnp.bfloat16),
                   preferred_element_type=jnp.float32)
    assert jnp.allclose(out2, ref2, atol=5e-2, rtol=1e-2)

    loss2 = jax.block_until_ready(nmf_loss(W2, H2, X2, use_bf16=True, tiles=small_tiles))
    loss2_ref = jnp.sum((X2 - ref2) ** 2)
    assert jnp.allclose(loss2, loss2_ref, rtol=1e-3)

    print("KERNEL_OK")
</pallas_src>

<mosaic_0001>
module attributes {stable_mosaic.version = 11 : i64} {
  func.func @_nmf_matmul_kernel(%arg0: i32, %arg1: i32, %arg2: i32, %arg3: memref<96x80xbf16, #tpu.memory_space<vmem>>, %arg4: memref<80x256xbf16, #tpu.memory_space<vmem>>, %arg5: memref<96x256xf32, #tpu.memory_space<vmem>>) attributes {dimension_semantics = [#tpu.dimension_semantics<parallel>, #tpu.dimension_semantics<parallel>, #tpu.dimension_semantics<arbitrary>], iteration_bounds = array<i64: 1, 1, 1>, scalar_prefetch = 0 : i64, scratch_operands = 0 : i64, tpu.core_type = #tpu.core_type<tc>, window_params = [{transform_indices = @transform_0, window_bounds = array<i64: 96, 80>}, {transform_indices = @transform_1, window_bounds = array<i64: 80, 256>}, {transform_indices = @transform_2, window_bounds = array<i64: 96, 256>}]} {
    %c0_i32 = arith.constant 0 : i32
    %0 = arith.cmpi eq, %arg2, %c0_i32 : i32
    %1 = arith.extui %0 : i1 to i32
    %c0_i32_0 = arith.constant 0 : i32
    %2 = arith.cmpi ne, %1, %c0_i32_0 : i32
    scf.if %2 {
      %cst_8 = arith.constant 0.000000e+00 : f32
      %9 = vector.broadcast %cst_8 : f32 to vector<96x256xf32>
      %c0_9 = arith.constant 0 : index
      %c0_10 = arith.constant 0 : index
      %10 = vector.load %arg5[%c0_9, %c0_10] : memref<96x256xf32, #tpu.memory_space<vmem>>, vector<96x256xf32>
      tpu.vector_store %arg5[%c0_9, %c0_10], %9 {strides = array<i32>} : memref<96x256xf32, #tpu.memory_space<vmem>>, vector<96x256xf32>,
    } else {
    }
    %c0 = arith.constant 0 : index
    %c0_1 = arith.constant 0 : index
    %3 = vector.load %arg5[%c0, %c0_1] : memref<96x256xf32, #tpu.memory_space<vmem>>, vector<96x256xf32>
    %c0_2 = arith.constant 0 : index
    %c0_3 = arith.constant 0 : index
    %4 = vector.load %arg3[%c0_2, %c0_3] : memref<96x80xbf16, #tpu.memory_space<vmem>>, vector<96x80xbf16>
    %c0_4 = arith.constant 0 : index
    %c0_5 = arith.constant 0 : index
    %5 = vector.load %arg4[%c0_4, %c0_5] : memref<80x256xbf16, #tpu.memory_space<vmem>>, vector<80x256xbf16>
    %cst = arith.constant dense<0.000000e+00> : vector<96x256xf32>
    %6 = tpu.matmul %4, %5, %cst {dimension_numbers = #tpu.dot_dimension_numbers<[1], [0], [0], [1], [0, 0, 1, 1], [], []>} : vector<96x80xbf16>, vector<80x256xbf16>, vector<96x256xf32> -> vector<96x256xf32>
    %7 = arith.addf %3, %6 : vector<96x256xf32>
    %c0_6 = arith.constant 0 : index
    %c0_7 = arith.constant 0 : index
    %8 = vector.load %arg5[%c0_6, %c0_7] : memref<96x256xf32, #tpu.memory_space<vmem>>, vector<96x256xf32>
    tpu.vector_store %arg5[%c0_6, %c0_7], %7 {strides = array<i32>} : memref<96x256xf32, #tpu.memory_space<vmem>>, vector<96x256xf32>,
    return
  }
  func.func @transform_0(%arg0: i32, %arg1: i32, %arg2: i32) -> (i32, i32) {
    %c0_i32 = arith.constant 0 : i32
    return %arg0, %arg2 : i32, i32
  }
  func.func @transform_1(%arg0: i32, %arg1: i32, %arg2: i32) -> (i32, i32) {
    %c0_i32 = arith.constant 0 : i32
    return %arg2, %arg1 : i32, i32
  }
  func.func @transform_2(%arg0: i32, %arg1: i32, %arg2: i32) -> (i32, i32) {
    %c0_i32 = arith.constant 0 : i32
    return %arg0, %arg1 : i32, i32
  }
}

</mosaic_0001>

<llo_original>
// kernel: nmf_forward.1
$region0: #{nmf_forward.1}
  #allocation0 [shape = 'u32[]', space=smem, size = 0x4, offset = 0x4, fixed_abs, tag = 'smem constant byte address 0x4 - core index']
  #allocation1 [shape = 'u32[72,128]{1,0:T(1,128)}', space=vmem, size = 0x9000, scoped, tag = 'internal scratch']
  %s0 = inlined_call_operand.vmem [shape: bf16[96,80], index: 0, kind: input, shape index: {}]
  %s1 = inlined_call_operand.vmem [shape: bf16[80,200], index: 1, kind: input, shape index: {}]
  %s2 = inlined_call_operand.hbm [shape: f32[96,200], index: 2, kind: output, shape index: {}]
  %s3 = sld [smem:[#allocation0]]
  $region22: #{nmf_forward.1} parent=0
    _
  %s5 = ssub.s32 1, %s3
  %s6 = scalar_select 0, %s5, %s3
  $region1: #{nmf_forward.1} parent=0
    #allocation2 [shape = 'u8[98304]{0}', space=vmem, size = 0x18000, scoped, tag = 'output window, operand 0, single buffered']
    #allocation3 [shape = 's32[1]{0}', space=sflag, size = 0x4, scoped, tag = 'scoped memory for nmf_forward.1']
    %7 = vsyncpa [#allocation3], 0
    // Predicated region
    $region2: #{nmf_forward.1} parent=1 // pred_check
      _
    $region3: #{nmf_forward.1} parent=1 // pred_check_branch
      %9 = sbr.rel (0) target = $region5
    $region4: #{nmf_forward.1} parent=1 // pred_region
      _
    $region5: #{nmf_forward.1} parent=1 // pred_fallthru
      _
    // Predicated region
    $region6: #{nmf_forward.1} parent=1 // pred_check
      _
    $region7: #{nmf_forward.1} parent=1 // pred_check_branch
      %11 = sbr.rel (0) target = $region9
    $region8: #{nmf_forward.1} parent=1 // pred_region
      _
    $region9: #{nmf_forward.1} parent=1 // pred_fallthru
      _
    %p13 = scmp.eq.s32.totalorder 0, 0
    // Predicated region
    $region10: #{nmf_forward.1} parent=1 // pred_check
      %p14 = pneg %p13
    $region11: #{nmf_forward.1} parent=1 // pred_check_branch
      %16 = sbr.rel (%p14) target = $region13
    $region12: #{nmf_forward.1} parent=1 // pred_region
      %17 = vst [vmem:[#allocation2] sm:$0xff] 0.0
      %18 = vst [vmem:[#allocation2 + $0x8] sm:$0xff] 0.0
      %19 = vst [vmem:[#allocation2 + $0x10] sm:$0xff] 0.0
      %20 = vst [vmem:[#allocation2 + $0x18] sm:$0xff] 0.0
      %21 = vst [vmem:[#allocation2 + $0x20] sm:$0xff] 0.0
      %22 = vst [vmem:[#allocation2 + $0x28] sm:$0xff] 0.0
      %23 = vst [vmem:[#allocation2 + $0x30] sm:$0xff] 0.0
      %24 = vst [vmem:[#allocation2 + $0x38] sm:$0xff] 0.0
      %25 = vst [vmem:[#allocation2 + $0x40] sm:$0xff] 0.0
      %26 = vst [vmem:[#allocation2 + $0x48] sm:$0xff] 0.0
      %27 = vst [vmem:[#allocation2 + $0x50] sm:$0xff] 0.0
      %28 = vst [vmem:[#allocation2 + $0x58] sm:$0xff] 0.0
      %29 = vst [vmem:[#allocation2 + $0x60] sm:$0xff] 0.0
      %30 = vst [vmem:[#allocation2 + $0x68] sm:$0xff] 0.0
      %31 = vst [vmem:[#allocation2 + $0x70] sm:$0xff] 0.0
      %32 = vst [vmem:[#allocation2 + $0x78] sm:$0xff] 0.0
      %33 = vst [vmem:[#allocation2 + $0x80] sm:$0xff] 0.0
      %34 = vst [vmem:[#allocation2 + $0x88] sm:$0xff] 0.0
      %35 = vst [vmem:[#allocation2 + $0x90] sm:$0xff] 0.0
      %36 = vst [vmem:[#allocation2 + $0x98] sm:$0xff] 0.0
      %37 = vst [vmem:[#allocation2 + $0xa0] sm:$0xff] 0.0
      %38 = vst [vmem:[#allocation2 + $0xa8] sm:$0xff] 0.0
      %39 = vst [vmem:[#allocation2 + $0xb0] sm:$0xff] 0.0
      %40 = vst [vmem:[#allocation2 + $0xb8] sm:$0xff] 0.0
    $region13: #{nmf_forward.1} parent=1 // pred_fallthru
      _
    %v41 = vld [vmem:[#allocation2] sm:$0xff]
    %v42 = vld [vmem:[#allocation2 + $0x8] sm:$0xff]
    %v43 = vld [vmem:[#allocation2 + $0x10] sm:$0xff]
    %v44 = vld [vmem:[#allocation2 + $0x18] sm:$0xff]
    %v45 = vld [vmem:[#allocation2 + $0x20] sm:$0xff]
    %v46 = vld [vmem:[#allocation2 + $0x28] sm:$0xff]
    %v47 = vld [vmem:[#allocation2 + $0x30] sm:$0xff]
    %v48 = vld [vmem:[#allocation2 + $0x38] sm:$0xff]
    %v49 = vld [vmem:[#allocation2 + $0x40] sm:$0xff]
    %v50 = vld [vmem:[#allocation2 + $0x48] sm:$0xff]
    %v51 = vld [vmem:[#allocation2 + $0x50] sm:$0xff]
    %v52 = vld [vmem:[#allocation2 + $0x58] sm:$0xff]
    %v53 = vld [vmem:[#allocation2 + $0x60] sm:$0xff]
    %v54 = vld [vmem:[#allocation2 + $0x68] sm:$0xff]
    %v55 = vld [vmem:[#allocation2 + $0x70] sm:$0xff]
    %v56 = vld [vmem:[#allocation2 + $0x78] sm:$0xff]
    %v57 = vld [vmem:[#allocation2 + $0x80] sm:$0xff]
    %v58 = vld [vmem:[#allocation2 + $0x88] sm:$0xff]
    %v59 = vld [vmem:[#allocation2 + $0x90] sm:$0xff]
    %v60 = vld [vmem:[#allocation2 + $0x98] sm:$0xff]
    %v61 = vld [vmem:[#allocation2 + $0xa0] sm:$0xff]
    %v62 = vld [vmem:[#allocation2 + $0xa8] sm:$0xff]
    %v63 = vld [vmem:[#allocation2 + $0xb0] sm:$0xff]
    %v64 = vld [vmem:[#allocation2 + $0xb8] sm:$0xff]
    %v65 = vld [vmem:[%s0] sm:$0xf]
    %v66 = vld [vmem:[%s0 + $0x4] sm:$0xf]
    %v67 = vld [vmem:[%s0 + $0x8] sm:$0xf]
    %v68 = vld [vmem:[%s0 + $0xc] sm:$0xf]
    %v69 = vld [vmem:[%s0 + $0x10] sm:$0xf]
    %v70 = vld [vmem:[%s0 + $0x14] sm:$0xf]
    %v71 = vld [vmem:[%s0 + $0x18] sm:$0xf]
    %v72 = vld [vmem:[%s0 + $0x1c] sm:$0xf]
    %v73 = vld [vmem:[%s0 + $0x20] sm:$0xf]
    %v74 = vld [vmem:[%s0 + $0x24] sm:$0xf]
    %v75 = vld [vmem:[%s0 + $0x28] sm:$0xf]
    %v76 = vld [vmem:[%s0 + $0x2c] sm:$0xf]
    %v77 = vld [vmem:[%s1] sm:$0xff]
    %v78 = vld [vmem:[%s1 + $0x8] sm:$0xff]
    %v79 = vld [vmem:[%s1 + $0x10] sm:$0xff]
    %v80 = vld [vmem:[%s1 + $0x18] sm:$0xff]
    %v81 = vld [vmem:[%s1 + $0x20] sm:$0xff]
    %v82 = vld [vmem:[%s1 + $0x28] sm:$0xff]
    %v83 = vld [vmem:[%s1 + $0x30] sm:$0xff]
    %v84 = vld [vmem:[%s1 + $0x38] sm:$0xff]
    %v85 = vld [vmem:[%s1 + $0x40] sm:$0xff]
    %v86 = vld [vmem:[%s1 + $0x48] sm:$0xff]
    %v99 = vunpack.c.l.b16 %v65
    %v100 = vunpack.c.l.b16 %v66
    %v101 = vunpack.c.l.b16 %v67
    %v102 = vunpack.c.l.b16 %v68
    %v103 = vunpack.c.l.b16 %v69
    %v104 = vunpack.c.l.b16 %v70
    %v105 = vunpack.c.l.b16 %v71
    %v106 = vunpack.c.l.b16 %v72
    %v107 = vunpack.c.l.b16 %v73
    %v108 = vunpack.c.l.b16 %v74
    %v109 = vunpack.c.l.b16 %v75
    %v110 = vunpack.c.l.b16 %v76
    %v111 = vpack.c.b16 %v100, %v99
    %v112 = vpack.c.b16 %v102, %v101
    %v113 = vpack.c.b16 %v104, %v103
    %v114 = vpack.c.b16 %v106, %v105
    %v115 = vpack.c.b16 %v108, %v107
    %v116 = vpack.c.b16 %v110, %v109
    %v127 = vunpack.c.l.b16 %v77
    %v128 = vunpack.c.h.b16 %v77
    %v129 = vunpack.c.l.b16 %v78
    %v130 = vunpack.c.h.b16 %v78
    %v131 = vunpack.c.l.b16 %v79
    %v132 = vunpack.c.h.b16 %v79
    %v133 = vunpack.c.l.b16 %v80
    %v134 = vunpack.c.h.b16 %v80
    %v135 = vunpack.c.l.b16 %v81
    %v136 = vunpack.c.h.b16 %v81
    %v137 = vunpack.c.l.b16 %v82
    %v138 = vunpack.c.h.b16 %v82
    %v139 = vunpack.c.l.b16 %v83
    %v140 = vunpack.c.h.b16 %v83
    %v141 = vunpack.c.l.b16 %v84
    %v142 = vunpack.c.h.b16 %v84
    %v143 = vunpack.c.l.b16 %v85
    %v144 = vunpack.c.h.b16 %v85
    %v145 = vunpack.c.l.b16 %v86
    %v146 = vunpack.c.h.b16 %v86
    %v147 = vpack.c.b16 %v129, %v127
    %v148 = vpack.c.b16 %v130, %v128
    %v149 = vpack.c.b16 %v133, %v131
    %v150 = vpack.c.b16 %v134, %v132
    %v151 = vpack.c.b16 %v137, %v135
    %v152 = vpack.c.b16 %v138, %v136
    %v153 = vpack.c.b16 %v141, %v139
    %v154 = vpack.c.b16 %v142, %v140
    %v155 = vpack.c.b16 %v145, %v143
    %v156 = vpack.c.b16 %v146, %v144
    %vm167 = vcmask 654336
    %v169 = vsel %vm167, %v111, 0
    %v172 = vsel %vm167, %v112, 0
    %v175 = vsel %vm167, %v113, 0
    %v178 = vsel %vm167, %v114, 0
    %v181 = vsel %vm167, %v115, 0
    %v184 = vsel %vm167, %v116, 0
    %186 = vmatpush.bf16.msra.mxu0 0
    %187 = vmatpush.bf16.msra.mxu0 0
    %188 = vmatpush.bf16.msra.mxu0 0
    %189 = vmatpush.bf16.msra.mxu0 %v155
    %190 = vmatpush.bf16.msra.mxu0 %v153
    %191 = vmatpush.bf16.msra.mxu0 %v151
    %192 = vmatpush.bf16.msra.mxu0 %v149
    %193 = vmatpush.bf16.msra.mxu0 %v147
    %194 = vmatmul.bf16.gmra.mxu0 %v169
    %v195 = vpop.f32.mrf.mxu0
    %v196 = vadd.f32 0.0, %v195
    %v197 = vpop.f32.mrf.mxu0
    %v198 = vadd.f32 0.0, %v197
    %199 = vmatmul.bf16.gmra.mxu0 %v172
    %v200 = vpop.f32.mrf.mxu0
    %v201 = vadd.f32 0.0, %v200
    %v202 = vpop.f32.mrf.mxu0
    %v203 = vadd.f32 0.0, %v202
    %204 = vmatmul.bf16.gmra.mxu0 %v175
    %v205 = vpop.f32.mrf.mxu0
    %v206 = vadd.f32 0.0, %v205
    %v207 = vpop.f32.mrf.mxu0
    %v208 = vadd.f32 0.0, %v207
    %209 = vmatmul.bf16.gmra.mxu0 %v178
    %v210 = vpop.f32.mrf.mxu0
    %v211 = vadd.f32 0.0, %v210
    %v212 = vpop.f32.mrf.mxu0
    %v213 = vadd.f32 0.0, %v212
    %214 = vmatmul.bf16.gmra.mxu0 %v181
    %v215 = vpop.f32.mrf.mxu0
    %v216 = vadd.f32 0.0, %v215
    %v217 = vpop.f32.mrf.mxu0
    %v218 = vadd.f32 0.0, %v217
    %219 = vmatmul.bf16.gmra.mxu0 %v184
    %v220 = vpop.f32.mrf.mxu0
    %v221 = vadd.f32 0.0, %v220
    %v222 = vpop.f32.mrf.mxu0
    %v223 = vadd.f32 0.0, %v222
    %224 = vdwg.mxu0
    %225 = vmatpush.bf16.msra.mxu0 0
    %226 = vmatpush.bf16.msra.mxu0 0
    %227 = vmatpush.bf16.msra.mxu0 0
    %228 = vmatpush.bf16.msra.mxu0 %v156
    %229 = vmatpush.bf16.msra.mxu0 %v154
    %230 = vmatpush.bf16.msra.mxu0 %v152
    %231 = vmatpush.bf16.msra.mxu0 %v150
    %232 = vmatpush.bf16.msra.mxu0 %v148
    %233 = vmatmul.bf16.gmra.mxu0 %v169
    %v234 = vpop.f32.mrf.mxu0
    %v235 = vadd.f32 0.0, %v234
    %v236 = vpop.f32.mrf.mxu0
    %v237 = vadd.f32 0.0, %v236
    %238 = vmatmul.bf16.gmra.mxu0 %v172
    %v239 = vpop.f32.mrf.mxu0
    %v240 = vadd.f32 0.0, %v239
    %v241 = vpop.f32.mrf.mxu0
    %v242 = vadd.f32 0.0, %v241
    %243 = vmatmul.bf16.gmra.mxu0 %v175
    %v244 = vpop.f32.mrf.mxu0
    %v245 = vadd.f32 0.0, %v244
    %v246 = vpop.f32.mrf.mxu0
    %v247 = vadd.f32 0.0, %v246
    %248 = vmatmul.bf16.gmra.mxu0 %v178
    %v249 = vpop.f32.mrf.mxu0
    %v250 = vadd.f32 0.0, %v249
    %v251 = vpop.f32.mrf.mxu0
    %v252 = vadd.f32 0.0, %v251
    %253 = vmatmul.bf16.gmra.mxu0 %v181
    %v254 = vpop.f32.mrf.mxu0
    %v255 = vadd.f32 0.0, %v254
    %v256 = vpop.f32.mrf.mxu0
    %v257 = vadd.f32 0.0, %v256
    %258 = vmatmul.bf16.gmra.mxu0 %v184
    %v259 = vpop.f32.mrf.mxu0
    %v260 = vadd.f32 0.0, %v259
    %v261 = vpop.f32.mrf.mxu0
    %v262 = vadd.f32 0.0, %v261
    %263 = vdwg.mxu0
    %v264 = vadd.f32 %v41, %v196
    %v265 = vadd.f32 %v42, %v235
    %v266 = vadd.f32 %v43, %v198
    %v267 = vadd.f32 %v44, %v237
    %v268 = vadd.f32 %v45, %v201
    %v269 = vadd.f32 %v46, %v240
    %v270 = vadd.f32 %v47, %v203
    %v271 = vadd.f32 %v48, %v242
    %v272 = vadd.f32 %v49, %v206
    %v273 = vadd.f32 %v50, %v245
    %v274 = vadd.f32 %v51, %v208
    %v275 = vadd.f32 %v52, %v247
    %v276 = vadd.f32 %v53, %v211
    %v277 = vadd.f32 %v54, %v250
    %v278 = vadd.f32 %v55, %v213
    %v279 = vadd.f32 %v56, %v252
    %v280 = vadd.f32 %v57, %v216
    %v281 = vadd.f32 %v58, %v255
    %v282 = vadd.f32 %v59, %v218
    %v283 = vadd.f32 %v60, %v257
    %v284 = vadd.f32 %v61, %v221
    %v285 = vadd.f32 %v62, %v260
    %v286 = vadd.f32 %v63, %v223
    %v287 = vadd.f32 %v64, %v262
    %288 = vst [vmem:[#allocation2] sm:$0xff] %v264
    %289 = vst [vmem:[#allocation2 + $0x8] sm:$0xff] %v265
    %290 = vst [vmem:[#allocation2 + $0x10] sm:$0xff] %v266
    %291 = vst [vmem:[#allocation2 + $0x18] sm:$0xff] %v267
    %292 = vst [vmem:[#allocation2 + $0x20] sm:$0xff] %v268
    %293 = vst [vmem:[#allocation2 + $0x28] sm:$0xff] %v269
    %294 = vst [vmem:[#allocation2 + $0x30] sm:$0xff] %v270
    %295 = vst [vmem:[#allocation2 + $0x38] sm:$0xff] %v271
    %296 = vst [vmem:[#allocation2 + $0x40] sm:$0xff] %v272
    %297 = vst [vmem:[#allocation2 + $0x48] sm:$0xff] %v273
    %298 = vst [vmem:[#allocation2 + $0x50] sm:$0xff] %v274
    %299 = vst [vmem:[#allocation2 + $0x58] sm:$0xff] %v275
    %300 = vst [vmem:[#allocation2 + $0x60] sm:$0xff] %v276
    %301 = vst [vmem:[#allocation2 + $0x68] sm:$0xff] %v277
    %302 = vst [vmem:[#allocation2 + $0x70] sm:$0xff] %v278
    %303 = vst [vmem:[#allocation2 + $0x78] sm:$0xff] %v279
    %304 = vst [vmem:[#allocation2 + $0x80] sm:$0xff] %v280
    %305 = vst [vmem:[#allocation2 + $0x88] sm:$0xff] %v281
    %306 = vst [vmem:[#allocation2 + $0x90] sm:$0xff] %v282
    %307 = vst [vmem:[#allocation2 + $0x98] sm:$0xff] %v283
    %308 = vst [vmem:[#allocation2 + $0xa0] sm:$0xff] %v284
    %309 = vst [vmem:[#allocation2 + $0xa8] sm:$0xff] %v285
    %310 = vst [vmem:[#allocation2 + $0xb0] sm:$0xff] %v286
    %311 = vst [vmem:[#allocation2 + $0xb8] sm:$0xff] %v287
    // Predicated region
    $region14: #{nmf_forward.1} parent=1 // pred_check
      _
    $region15: #{nmf_forward.1} parent=1 // pred_check_branch
      %313 = sbr.rel (0) target = $region17
    $region16: #{nmf_forward.1} parent=1 // pred_region
      %315 = vsyncadd [#allocation3], 0
      %s316 = sshll.u32 [#allocation2], 4
      %s317 = int_to_ptr.vmem [resolvable:$true] %s316
      %s318 = sshll.u32 %s2, 4
      %s319 = int_to_ptr.hbm [resolvable:$true] %s318
      %324 = dma.vmem_to_hbm [thread:$0]  %s317, 3072, %s319, [#allocation3], 256, 256, 16
    $region17: #{nmf_forward.1} parent=1 // pred_fallthru
      _
    // Predicated region
    $region18: #{nmf_forward.1} parent=1 // pred_check
      _
    $region19: #{nmf_forward.1} parent=1 // pred_check_branch
      %326 = sbr.rel (0) target = $region21
    $region20: #{nmf_forward.1} parent=1 // pred_region
      %328 = dma.done [#allocation3], 3072
    $region21: #{nmf_forward.1} parent=1 // pred_fallthru
      _
    %329 = vsyncpa [#allocation3], 1

</llo_original>
